<compile_context>
chip_gen: v7x
topology: tpu7x:2x2x1
jax: 0.10.0
libtpu: 0.0.40
codegen_flags: <defaults>
</compile_context>

<pallas_src>
import functools

import jax
import jax.numpy as jnp
from jax.experimental import pallas as pl
from jax.experimental.pallas import tpu as pltpu


def _minibatch_stddev_kernel(x_ref, z_ref, *, G, F, Cf, HW):
    """x_ref: (G, 1, 1, C*HW) block;  z_ref: (G, 1, 1, (C+F)*HW) block."""
    S = Cf * HW          # elements per new feature per batch row (Cf*H*W)
    CHW = F * S          # = C*H*W

    xs = x_ref[...]                                     # keep input dtype
    # Pass-through channels: one flat, lane-dense store.
    z_ref[:, :, :, 0:CHW] = xs

    xf = xs.astype(jnp.float32)                         # stats always in f32
    inv_g = 1.0 / G
    inv_s = 1.0 / S
    for f in range(F):                                  # F is tiny & static (usually 1)
        v = xf[:, :, :, f * S:(f + 1) * S]              # (G, 1, 1, S)
        mu = jnp.sum(v, axis=0, keepdims=True) * inv_g  # mean over group axis
        d = v - mu
        var = jnp.sum(d * d, axis=0, keepdims=True) * inv_g
        sd = jnp.sqrt(var + 1e-8)                       # (1, 1, 1, S)
        stat = jnp.sum(sd, axis=-1, keepdims=True) * inv_s          # (1, 1, 1, 1)
        # One store covers the stat channel for every g in the group.
        z_ref[:, :, :, CHW + f * HW: CHW + (f + 1) * HW] = (
            jnp.broadcast_to(stat, (G, 1, 1, HW)).astype(z_ref.dtype))


def standard_deviation_layer(x, group_size=4, num_new_features=1):
    """Pallas implementation of StandardDeviationLayer.forward (NCHW)."""
    B, C, H, W = x.shape
    G = min(group_size, B)
    F = num_new_features
    assert B % G == 0, "batch must be divisible by the effective group size"
    assert C % F == 0, "channels must be divisible by numNewFeatures"
    M = B // G
    Cf = C // F
    HW = H * W
    CHW = C * HW
    L = CHW + F * HW                       # flattened (C+F, H, W) per batch row

    # Lane-dense grouped view (free row-major reshape; G is the outer batch split,
    # exactly matching torch's reshape([G, -1, F, Cf, h, w])).
    xg = x.reshape(G, M, 1, CHW)

    itemsize = jnp.dtype(x.dtype).itemsize
    # double-buffered in/out blocks + 1 MiB slack; clamp to v7x physical VMEM.
    est = 2 * (G * CHW + G * L) * itemsize + (1 << 20)
    vmem_limit = int(min(max(est, 32 * 1024 * 1024), 64 * 1024 * 1024))
    # TODO(synk): for extreme C*H*W (per-step block > ~16 MiB) also chunk the lane axis.

    kernel = functools.partial(_minibatch_stddev_kernel, G=G, F=F, Cf=Cf, HW=HW)
    zg = pl.pallas_call(
        kernel,
        out_shape=jax.ShapeDtypeStruct((G, M, 1, L), x.dtype),
        grid=(M,),
        in_specs=[pl.BlockSpec((G, 1, 1, CHW), lambda m: (0, m, 0, 0))],
        out_specs=pl.BlockSpec((G, 1, 1, L), lambda m: (0, m, 0, 0)),
        compiler_params=pltpu.CompilerParams(
            dimension_semantics=("parallel",),
            vmem_limit_bytes=vmem_limit),
    )(xg)
    # Free row-major reshape back to NCHW; lanes [0, C*HW) are the original
    # channels, lanes [C*HW + f*HW, C*HW + (f+1)*HW) are the new stat channels.
    return zg.reshape(B, C + F, H, W)


def _reference(x, group_size=4, num_new_features=1):
    """Pure-JAX port of the PyTorch forward, for verification."""
    b, c, h, w = x.shape
    G = min(group_size, b)
    F = num_new_features
    y = x.reshape(G, -1, F, c // F, h, w)
    y = y - jnp.mean(y, axis=0, keepdims=True)
    y = jnp.mean(y * y, axis=0, keepdims=True)
    y = jnp.sqrt(y + 1e-8)
    y = jnp.mean(y, axis=(3, 4, 5), keepdims=True)       # (1, M, F, 1, 1, 1)
    y = jnp.squeeze(y, axis=3)                            # (1, M, F, 1, 1)
    y = jnp.broadcast_to(y, (G,) + y.shape[1:3] + (h, w))
    y = y.reshape(b, F, h, w)
    return jnp.concatenate([x, y], axis=1)


if __name__ == "__main__":
    key = jax.random.PRNGKey(0)

    # Main test: group_size=4 -> G=4, M=2, F=1, Cf=4
    B, C, H, W = 8, 4, 16, 16
    x = jax.random.normal(key, (B, C, H, W), dtype=jnp.float32)

    z = standard_deviation_layer(x, group_size=4, num_new_features=1)
    z = jax.block_until_ready(z)
    z_ref = _reference(x, group_size=4, num_new_features=1)
    assert z.shape == (B, C + 1, H, W)
    assert jnp.allclose(z, z_ref, atol=1e-5, rtol=1e-5), "mismatch vs reference (F=1)"

    # Multi-feature check: F=2 -> Cf=2
    z2 = standard_deviation_layer(x, group_size=4, num_new_features=2)
    z2 = jax.block_until_ready(z2)
    z2_ref = _reference(x, group_size=4, num_new_features=2)
    assert z2.shape == (B, C + 2, H, W)
    assert jnp.allclose(z2, z2_ref, atol=1e-5, rtol=1e-5), "mismatch vs reference (F=2)"

    print("KERNEL_OK")
</pallas_src>

<mosaic_0001>
module attributes {stable_mosaic.version = 11 : i64} {
  func.func @_minibatch_stddev_kernel(%arg0: i32, %arg1: memref<4x1x1x1024xf32, #tpu.memory_space<vmem>>, %arg2: memref<4x1x1x1280xf32, #tpu.memory_space<vmem>>) attributes {dimension_semantics = [#tpu.dimension_semantics<parallel>], iteration_bounds = array<i64: 2>, scalar_prefetch = 0 : i64, scratch_operands = 0 : i64, tpu.core_type = #tpu.core_type<tc>, window_params = [{transform_indices = @transform_0, window_bounds = array<i64: 4, 1, 1, 1024>}, {transform_indices = @transform_1, window_bounds = array<i64: 4, 1, 1, 1280>}]} {
    %c0 = arith.constant 0 : index
    %c0_0 = arith.constant 0 : index
    %c0_1 = arith.constant 0 : index
    %c0_2 = arith.constant 0 : index
    %0 = vector.load %arg1[%c0, %c0_0, %c0_1, %c0_2] : memref<4x1x1x1024xf32, #tpu.memory_space<vmem>>, vector<4x1x1x1024xf32>
    %c0_3 = arith.constant 0 : index
    %c0_4 = arith.constant 0 : index
    %c0_5 = arith.constant 0 : index
    %c0_6 = arith.constant 0 : index
    %1 = vector.load %arg2[%c0_3, %c0_4, %c0_5, %c0_6] : memref<4x1x1x1280xf32, #tpu.memory_space<vmem>>, vector<4x1x1x1024xf32>
    tpu.vector_store %arg2[%c0_3, %c0_4, %c0_5, %c0_6], %0 {strides = array<i32>} : memref<4x1x1x1280xf32, #tpu.memory_space<vmem>>, vector<4x1x1x1024xf32>,
    %cst = arith.constant dense<0.000000e+00> : vector<1x1x1024xf32>
    %2 = vector.multi_reduction <add>, %0, %cst [0] : vector<4x1x1x1024xf32> to vector<1x1x1024xf32>
    %3 = vector.shape_cast %2 : vector<1x1x1024xf32> to vector<1x1x1x1024xf32>
    %cst_7 = arith.constant 2.500000e-01 : f32
    %4 = vector.broadcast %cst_7 : f32 to vector<1x1x1x1024xf32>
    %5 = arith.mulf %3, %4 : vector<1x1x1x1024xf32>
    %6 = vector.broadcast %5 : vector<1x1x1x1024xf32> to vector<4x1x1x1024xf32>
    %7 = arith.subf %0, %6 : vector<4x1x1x1024xf32>
    %8 = arith.mulf %7, %7 : vector<4x1x1x1024xf32>
    %cst_8 = arith.constant dense<0.000000e+00> : vector<1x1x1024xf32>
    %9 = vector.multi_reduction <add>, %8, %cst_8 [0] : vector<4x1x1x1024xf32> to vector<1x1x1024xf32>
    %10 = vector.shape_cast %9 : vector<1x1x1024xf32> to vector<1x1x1x1024xf32>
    %cst_9 = arith.constant 2.500000e-01 : f32
    %11 = vector.broadcast %cst_9 : f32 to vector<1x1x1x1024xf32>
    %12 = arith.mulf %10, %11 : vector<1x1x1x1024xf32>
    %cst_10 = arith.constant 9.99999993E-9 : f32
    %13 = vector.broadcast %cst_10 : f32 to vector<1x1x1x1024xf32>
    %14 = arith.addf %12, %13 : vector<1x1x1x1024xf32>
    %15 = math.sqrt %14 : vector<1x1x1x1024xf32>
    %cst_11 = arith.constant dense<0.000000e+00> : vector<1x1x1xf32>
    %16 = vector.multi_reduction <add>, %15, %cst_11 [3] : vector<1x1x1x1024xf32> to vector<1x1x1xf32>
    %17 = vector.shape_cast %16 : vector<1x1x1xf32> to vector<1x1x1x1xf32>
    %cst_12 = arith.constant 9.765625E-4 : f32
    %18 = vector.broadcast %cst_12 : f32 to vector<1x1x1x1xf32>
    %19 = arith.mulf %17, %18 : vector<1x1x1x1xf32>
    %20 = vector.shape_cast %19 : vector<1x1x1x1xf32> to vector<1x1x1x1xf32>
    %21 = vector.broadcast %20 : vector<1x1x1x1xf32> to vector<4x1x1x256xf32>
    %c0_13 = arith.constant 0 : index
    %c0_14 = arith.constant 0 : index
    %c0_15 = arith.constant 0 : index
    %c1024 = arith.constant 1024 : index
    %22 = vector.load %arg2[%c0_13, %c0_14, %c0_15, %c1024] : memref<4x1x1x1280xf32, #tpu.memory_space<vmem>>, vector<4x1x1x256xf32>
    tpu.vector_store %arg2[%c0_13, %c0_14, %c0_15, %c1024], %21 {strides = array<i32>} : memref<4x1x1x1280xf32, #tpu.memory_space<vmem>>, vector<4x1x1x256xf32>,
    return
  }
  func.func @transform_0(%arg0: i32) -> (i32, i32, i32, i32) {
    %c0_i32 = arith.constant 0 : i32
    %c0_i32_0 = arith.constant 0 : i32
    %c0_i32_1 = arith.constant 0 : i32
    %c0_i32_2 = arith.constant 0 : i32
    return %c0_i32, %arg0, %c0_i32_0, %c0_i32_1 : i32, i32, i32, i32
  }
  func.func @transform_1(%arg0: i32) -> (i32, i32, i32, i32) {
    %c0_i32 = arith.constant 0 : i32
    %c0_i32_0 = arith.constant 0 : i32
    %c0_i32_1 = arith.constant 0 : i32
    %c0_i32_2 = arith.constant 0 : i32
    return %c0_i32, %arg0, %c0_i32_0, %c0_i32_1 : i32, i32, i32, i32
  }
}

</mosaic_0001>

<llo_original>
// kernel: tpu_custom_call.1
$region0: #{tpu_custom_call.1}
  #allocation0 [shape = 'u32[]', space=smem, size = 0x4, offset = 0x4, fixed_abs, tag = 'smem constant byte address 0x4 - core index']
  #allocation1 [shape = 'u32[144,128]{1,0:T(1,128)}', space=vmem, size = 0x12000, scoped, tag = 'internal scratch']
  %s0 = inlined_call_operand.hbm [shape: f32[4,2,1,1024], index: 0, kind: input, shape index: {}]
  %s1 = inlined_call_operand.hbm [shape: f32[4,2,1,1280], index: 1, kind: output, shape index: {}]
  %s2 = sld [smem:[#allocation0]]
  $region41: #{tpu_custom_call.1} parent=0
    _
  %s4 = ssub.s32 1, %s2
  %s5 = scalar_select 0, %s4, %s2
  $region1: #{tpu_custom_call.1} parent=0
    #allocation2 [shape = 'u8[32768]{0}', space=vmem, size = 0x8000, scoped, tag = 'input window, operand 0']
    #allocation3 [shape = 's32[2]{0}', space=sflag, size = 0x8, scoped, tag = 'scoped memory for tpu_custom_call.1']
    #allocation4 [shape = 's32[2]{0}', space=sflag, size = 0x8, scoped, tag = 'scoped memory for tpu_custom_call.1']
    #allocation5 [shape = 'u8[40960]{0}', space=vmem, size = 0xa000, scoped, tag = 'output window, operand 0']
    %6 = vsyncpa [#allocation3], 0
    %s7 = scalar_lea.sflag [#allocation3], 1
    %8 = vsyncpa %s7, 0
    %9 = vsyncpa [#allocation4], 0
    %s10 = scalar_lea.sflag [#allocation4], 1
    %11 = vsyncpa %s10, 0
    loop: start=0, step=1, limit=4
    $region2: #{tpu_custom_call.1} parent=1 // loop_pre_header
      _
    $region3: #{tpu_custom_call.1} parent=1 // loop_header
      %s13 = sphi 0, %s17
      %p14 = scmp.ge.s32.totalorder %s13, 4
      %s23 = sphi 0, %s25
      %s26 = sphi 0, %s23
      %s27 = sphi 0, %s26
      %s43 = sphi 0, %s27
      %s49 = sphi 0, %s51
      %s52 = sphi 0, %s49
      %s53 = sphi 0, %s52
      %s69 = sphi 0, %s53
    $region4: #{tpu_custom_call.1} parent=1 // loop_header_branch
      %16 = sbr.rel (%p14) target = $region8
    $region5: #{tpu_custom_call.1} parent=1 // loop_body
      %s18 = ssub.s32 %s13, 1
      %s19 = ssub.s32 %s13, 2
      %s20 = sadd.s32 %s13, 1
      %s21 = ssub.s32 %s13, %s20
      %p22 = scmp.eq.s32.totalorder %s21, 0
      %s24 = sadd.s32 %s23, 1
      %s25 = scalar_select %p22, %s23, %s24
      %p28 = pneg %p22
      %p29 = scmp.eq.s32.totalorder %s13, 1
      %p30 = por %p28, %p29
      %p31 = scmp.ne.s32.totalorder %s23, %s26
      %p32 = scmp.eq.s32.totalorder %s13, 0
      %p33 = por %p31, %p32
      %p34 = scmp.ne.s32.totalorder %s23, %s26
      %p35 = scmp.eq.s32.totalorder %s18, 1
      %p36 = por %p34, %p35
      %p37 = scmp.ne.s32.totalorder %s26, %s27
      %p38 = scmp.eq.s32.totalorder %s18, 0
      %p39 = por %p37, %p38
      %p40 = scmp.ne.s32.totalorder %s26, %s27
      %p41 = scmp.eq.s32.totalorder %s19, 1
      %p42 = por %p40, %p41
      %p44 = scmp.ne.s32.totalorder %s27, %s43
      %p45 = scmp.eq.s32.totalorder %s19, 0
      %p46 = por %p44, %p45
      %s47 = ssub.s32 %s13, %s20
      %p48 = scmp.eq.s32.totalorder %s47, 0
      %s50 = sadd.s32 %s49, 1
      %s51 = scalar_select %p48, %s49, %s50
      %p54 = pneg %p48
      %p55 = scmp.eq.s32.totalorder %s13, 1
      %p56 = por %p54, %p55
      %p57 = scmp.ne.s32.totalorder %s49, %s52
      %p58 = scmp.eq.s32.totalorder %s13, 0
      %p59 = por %p57, %p58
      %p60 = scmp.ne.s32.totalorder %s49, %s52
      %p61 = scmp.eq.s32.totalorder %s18, 1
      %p62 = por %p60, %p61
      %p63 = scmp.ne.s32.totalorder %s52, %s53
      %p64 = scmp.eq.s32.totalorder %s18, 0
      %p65 = por %p63, %p64
      %p66 = scmp.ne.s32.totalorder %s52, %s53
      %p67 = scmp.eq.s32.totalorder %s19, 1
      %p68 = por %p66, %p67
      %p70 = scmp.ne.s32.totalorder %s53, %s69
      %p71 = scmp.eq.s32.totalorder %s19, 0
      %p72 = por %p70, %p71
      %p73 = scmp.le.s32.totalorder 1, %s13
      %p74 = scmp.lt.s32.totalorder %s13, 3
      %p75 = pnand %p73, %p74
      %p76 = pneg %p75
      // Predicated region
      $region9: #{tpu_custom_call.1} parent=5 // pred_check
        _
      $region10: #{tpu_custom_call.1} parent=5 // pred_check_branch
        %78 = sbr.rel (%p75) target = $region12
      $region11: #{tpu_custom_call.1} parent=5 // pred_region
        %s79 = ssub.s32 %s13, 1
      $region12: #{tpu_custom_call.1} parent=5 // pred_fallthru
        _
      %p80 = scmp.lt.s32.totalorder %s13, 2
      // Predicated region
      $region13: #{tpu_custom_call.1} parent=5 // pred_check
        %p81 = pneg %p80
      $region14: #{tpu_custom_call.1} parent=5 // pred_check_branch
        %83 = sbr.rel (%p81) target = $region16
      $region15: #{tpu_custom_call.1} parent=5 // pred_region
        // Predicated region
        $region17: #{tpu_custom_call.1} parent=15 // pred_check
          %p84 = pneg %p33
        $region18: #{tpu_custom_call.1} parent=15 // pred_check_branch
          %86 = sbr.rel (%p84) target = $region20
        $region19: #{tpu_custom_call.1} parent=15 // pred_region
          %s87 = sand.u32 %s23, 1
          %s88 = scalar_lea.sflag [#allocation3], %s87
          %s89 = sand.u32 %s23, 1
          %s90 = smul.addr %s89, 32
          %s91 = scalar_lea.vmem [#allocation2], %s90
          %s93 = ssub.s32 512, 512
          %94 = vsyncadd %s88, %s93
          %s95 = smul.addr %s13, 8
          %s96 = smul.addr %s95, 16
          %s97 = scalar_lea.hbm %s0, %s96
          %s98 = sshll.u32 %s91, 4
          %s99 = int_to_ptr.vmem [resolvable:$true] %s98
          %104 = dma.hbm_to_vmem [thread:$0]  %s97, 512, %s99, %s88, 256, 128, 8
        $region20: #{tpu_custom_call.1} parent=15 // pred_fallthru
          _
      $region16: #{tpu_custom_call.1} parent=5 // pred_fallthru
        _
      %p105 = scmp.le.s32.totalorder 1, %s13
      %p106 = scmp.lt.s32.totalorder %s13, 3
      %p107 = pnand %p105, %p106
      %p108 = pneg %p107
      // Predicated region
      $region21: #{tpu_custom_call.1} parent=5 // pred_check
        _
      $region22: #{tpu_custom_call.1} parent=5 // pred_check_branch
        %110 = sbr.rel (%p107) target = $region24
      $region23: #{tpu_custom_call.1} parent=5 // pred_region
        %s111 = ssub.s32 %s13, 1
        %s112 = sand.u32 %s26, 1
        %s113 = scalar_lea.sflag [#allocation3], %s112
        %s114 = sand.u32 %s26, 1
        %s115 = smul.addr %s114, 32
        %s116 = scalar_lea.vmem [#allocation2], %s115
        // Predicated region
        $region25: #{tpu_custom_call.1} parent=23 // pred_check
          %p117 = pneg %p39
        $region26: #{tpu_custom_call.1} parent=23 // pred_check_branch
          %119 = sbr.rel (%p117) target = $region28
        $region27: #{tpu_custom_call.1} parent=23 // pred_region
          %120 = dma.done %s113, 512
        $region28: #{tpu_custom_call.1} parent=23 // pred_fallthru
          _
        %s121 = sand.u32 %s26, 1
        %s122 = scalar_lea.sflag [#allocation3], %s121
        %s123 = sand.u32 %s26, 1
        %s124 = smul.addr %s123, 32
        %s125 = scalar_lea.vmem [#allocation2], %s124
        %p126 = pneg %p39
        %p127 = pneg %p36
        %p128 = pneg %p65
        %p129 = pneg %p62
        %s130 = sand.u32 %s52, 1
        %s131 = scalar_lea.sflag [#allocation4], %s130
        %s132 = sand.u32 %s52, 1
        %s133 = smul.addr %s132, 40
        %s134 = scalar_lea.vmem [#allocation5], %s133
        %v135 = vld [vmem:[%s116] sm:$0xff]
        %v136 = vld [vmem:[%s116 + $0x8] sm:$0xff]
        %v137 = vld [vmem:[%s116 + $0x10] sm:$0xff]
        %v138 = vld [vmem:[%s116 + $0x18] sm:$0xff]
        %139 = vst [vmem:[%s134] sm:$0xff] %v135
        %140 = vst [vmem:[%s134 + $0xa] sm:$0xff] %v136
        %141 = vst [vmem:[%s134 + $0x14] sm:$0xff] %v137
        %142 = vst [vmem:[%s134 + $0x1e] sm:$0xff] %v138
        %v147 = vlaneseq
        %v148 = vshrl.u32 %v147, 7
        %v149 = vsub.s32 0, %v148
        %v150 = vrot.slane %v135, %v149
        %v151 = vlaneseq
        %v152 = vshrl.u32 %v151, 7
        %v153 = vsub.s32 1, %v152
        %v154 = vrot.slane %v135, %v153
        %v155 = vlaneseq
        %v156 = vshrl.u32 %v155, 7
        %v157 = vsub.s32 2, %v156
        %v158 = vrot.slane %v135, %v157
        %v159 = vlaneseq
        %v160 = vshrl.u32 %v159, 7
        %v161 = vsub.s32 3, %v160
        %v162 = vrot.slane %v135, %v161
        %v163 = vlaneseq
        %v164 = vshrl.u32 %v163, 7
        %v165 = vsub.s32 4, %v164
        %v166 = vrot.slane %v135, %v165
        %v167 = vlaneseq
        %v168 = vshrl.u32 %v167, 7
        %v169 = vsub.s32 5, %v168
        %v170 = vrot.slane %v135, %v169
        %v171 = vlaneseq
        %v172 = vshrl.u32 %v171, 7
        %v173 = vsub.s32 6, %v172
        %v174 = vrot.slane %v135, %v173
        %v175 = vlaneseq
        %v176 = vshrl.u32 %v175, 7
        %v177 = vsub.s32 7, %v176
        %v178 = vrot.slane %v135, %v177
        %v179 = vlaneseq
        %v180 = vshrl.u32 %v179, 7
        %v181 = vsub.s32 0, %v180
        %v182 = vrot.slane %v136, %v181
        %v183 = vlaneseq
        %v184 = vshrl.u32 %v183, 7
        %v185 = vsub.s32 1, %v184
        %v186 = vrot.slane %v136, %v185
        %v187 = vlaneseq
        %v188 = vshrl.u32 %v187, 7
        %v189 = vsub.s32 2, %v188
        %v190 = vrot.slane %v136, %v189
        %v191 = vlaneseq
        %v192 = vshrl.u32 %v191, 7
        %v193 = vsub.s32 3, %v192
        %v194 = vrot.slane %v136, %v193
        %v195 = vlaneseq
        %v196 = vshrl.u32 %v195, 7
        %v197 = vsub.s32 4, %v196
        %v198 = vrot.slane %v136, %v197
        %v199 = vlaneseq
        %v200 = vshrl.u32 %v199, 7
        %v201 = vsub.s32 5, %v200
        %v202 = vrot.slane %v136, %v201
        %v203 = vlaneseq
        %v204 = vshrl.u32 %v203, 7
        %v205 = vsub.s32 6, %v204
        %v206 = vrot.slane %v136, %v205
        %v207 = vlaneseq
        %v208 = vshrl.u32 %v207, 7
        %v209 = vsub.s32 7, %v208
        %v210 = vrot.slane %v136, %v209
        %v211 = vlaneseq
        %v212 = vshrl.u32 %v211, 7
        %v213 = vsub.s32 0, %v212
        %v214 = vrot.slane %v137, %v213
        %v215 = vlaneseq
        %v216 = vshrl.u32 %v215, 7
        %v217 = vsub.s32 1, %v216
        %v218 = vrot.slane %v137, %v217
        %v219 = vlaneseq
        %v220 = vshrl.u32 %v219, 7
        %v221 = vsub.s32 2, %v220
        %v222 = vrot.slane %v137, %v221
        %v223 = vlaneseq
        %v224 = vshrl.u32 %v223, 7
        %v225 = vsub.s32 3, %v224
        %v226 = vrot.slane %v137, %v225
        %v227 = vlaneseq
        %v228 = vshrl.u32 %v227, 7
        %v229 = vsub.s32 4, %v228
        %v230 = vrot.slane %v137, %v229
        %v231 = vlaneseq
        %v232 = vshrl.u32 %v231, 7
        %v233 = vsub.s32 5, %v232
        %v234 = vrot.slane %v137, %v233
        %v235 = vlaneseq
        %v236 = vshrl.u32 %v235, 7
        %v237 = vsub.s32 6, %v236
        %v238 = vrot.slane %v137, %v237
        %v239 = vlaneseq
        %v240 = vshrl.u32 %v239, 7
        %v241 = vsub.s32 7, %v240
        %v242 = vrot.slane %v137, %v241
        %v243 = vlaneseq
        %v244 = vshrl.u32 %v243, 7
        %v245 = vsub.s32 0, %v244
        %v246 = vrot.slane %v138, %v245
        %v247 = vlaneseq
        %v248 = vshrl.u32 %v247, 7
        %v249 = vsub.s32 1, %v248
        %v250 = vrot.slane %v138, %v249
        %v251 = vlaneseq
        %v252 = vshrl.u32 %v251, 7
        %v253 = vsub.s32 2, %v252
        %v254 = vrot.slane %v138, %v253
        %v255 = vlaneseq
        %v256 = vshrl.u32 %v255, 7
        %v257 = vsub.s32 3, %v256
        %v258 = vrot.slane %v138, %v257
        %v259 = vlaneseq
        %v260 = vshrl.u32 %v259, 7
        %v261 = vsub.s32 4, %v260
        %v262 = vrot.slane %v138, %v261
        %v263 = vlaneseq
        %v264 = vshrl.u32 %v263, 7
        %v265 = vsub.s32 5, %v264
        %v266 = vrot.slane %v138, %v265
        %v267 = vlaneseq
        %v268 = vshrl.u32 %v267, 7
        %v269 = vsub.s32 6, %v268
        %v270 = vrot.slane %v138, %v269
        %v271 = vlaneseq
        %v272 = vshrl.u32 %v271, 7
        %v273 = vsub.s32 7, %v272
        %v274 = vrot.slane %v138, %v273
        %vm307 = vcmask 1040384
        %v308 = vsel %vm307, %v150, 0.0
        %v309 = vsel %vm307, %v182, 0.0
        %v310 = vadd.f32 %v308, %v309
        %v311 = vsel %vm307, %v214, 0.0
        %v312 = vadd.f32 %v310, %v311
        %v313 = vsel %vm307, %v246, 0.0
        %v314 = vadd.f32 %v312, %v313
        %v315 = vsel %vm307, %v154, 0.0
        %v316 = vsel %vm307, %v186, 0.0
        %v317 = vadd.f32 %v315, %v316
        %v318 = vsel %vm307, %v218, 0.0
        %v319 = vadd.f32 %v317, %v318
        %v320 = vsel %vm307, %v250, 0.0
        %v321 = vadd.f32 %v319, %v320
        %v322 = vsel %vm307, %v158, 0.0
        %v323 = vsel %vm307, %v190, 0.0
        %v324 = vadd.f32 %v322, %v323
        %v325 = vsel %vm307, %v222, 0.0
        %v326 = vadd.f32 %v324, %v325
        %v327 = vsel %vm307, %v254, 0.0
        %v328 = vadd.f32 %v326, %v327
        %v329 = vsel %vm307, %v162, 0.0
        %v330 = vsel %vm307, %v194, 0.0
        %v331 = vadd.f32 %v329, %v330
        %v332 = vsel %vm307, %v226, 0.0
        %v333 = vadd.f32 %v331, %v332
        %v334 = vsel %vm307, %v258, 0.0
        %v335 = vadd.f32 %v333, %v334
        %v336 = vsel %vm307, %v166, 0.0
        %v337 = vsel %vm307, %v198, 0.0
        %v338 = vadd.f32 %v336, %v337
        %v339 = vsel %vm307, %v230, 0.0
        %v340 = vadd.f32 %v338, %v339
        %v341 = vsel %vm307, %v262, 0.0
        %v342 = vadd.f32 %v340, %v341
        %v343 = vsel %vm307, %v170, 0.0
        %v344 = vsel %vm307, %v202, 0.0
        %v345 = vadd.f32 %v343, %v344
        %v346 = vsel %vm307, %v234, 0.0
        %v347 = vadd.f32 %v345, %v346
        %v348 = vsel %vm307, %v266, 0.0
        %v349 = vadd.f32 %v347, %v348
        %v350 = vsel %vm307, %v174, 0.0
        %v351 = vsel %vm307, %v206, 0.0
        %v352 = vadd.f32 %v350, %v351
        %v353 = vsel %vm307, %v238, 0.0
        %v354 = vadd.f32 %v352, %v353
        %v355 = vsel %vm307, %v270, 0.0
        %v356 = vadd.f32 %v354, %v355
        %v357 = vsel %vm307, %v178, 0.0
        %v358 = vsel %vm307, %v210, 0.0
        %v359 = vadd.f32 %v357, %v358
        %v360 = vsel %vm307, %v242, 0.0
        %v361 = vadd.f32 %v359, %v360
        %v362 = vsel %vm307, %v274, 0.0
        %v363 = vadd.f32 %v361, %v362
        %v364 = vmul.f32 %v314, 0.25
        %v365 = vmul.f32 %v321, 0.25
        %v366 = vmul.f32 %v328, 0.25
        %v367 = vmul.f32 %v335, 0.25
        %v368 = vmul.f32 %v342, 0.25
        %v369 = vmul.f32 %v349, 0.25
        %v370 = vmul.f32 %v356, 0.25
        %v371 = vmul.f32 %v363, 0.25
        %v380 = vcombine.low %v364, %v365
        %v381 = vcombine.low %v366, %v367
        %v382 = vcombine.low %v368, %v369
        %v383 = vcombine.low %v370, %v371
        %v385 = vunpack.c.l.s4 1966171168
        %v386 = vunpack.c.0.s8 %v385
        %v387 = vlaneseq
        %v388 = vshrl.u32 %v387, 7
        %v389 = vsub.s32 %v386, %v388
        %v390 = vrot.slane %v380, %v389
        %v392 = vunpack.c.l.s4 1966171168
        %v393 = vunpack.c.0.s8 %v392
        %v394 = vlaneseq
        %v395 = vshrl.u32 %v394, 7
        %v396 = vsub.s32 %v393, %v395
        %v397 = vrot.slane %v381, %v396
        %v399 = vunpack.c.l.s4 1966171168
        %v400 = vunpack.c.0.s8 %v399
        %v401 = vlaneseq
        %v402 = vshrl.u32 %v401, 7
        %v403 = vsub.s32 %v400, %v402
        %v404 = vrot.slane %v382, %v403
        %v406 = vunpack.c.l.s4 1966171168
        %v407 = vunpack.c.0.s8 %v406
        %v408 = vlaneseq
        %v409 = vshrl.u32 %v408, 7
        %v410 = vsub.s32 %v407, %v409
        %v411 = vrot.slane %v383, %v410
        %v412 = vcombine.low %v390, %v397
        %v413 = vcombine.low %v404, %v411
        %v415 = vunpack.c.l.s4 1966171168
        %v416 = vunpack.c.0.s8 %v415
        %v417 = vlaneseq
        %v418 = vshrl.u32 %v417, 7
        %v419 = vsub.s32 %v416, %v418
        %v420 = vrot.slane %v412, %v419
        %v422 = vunpack.c.l.s4 1966171168
        %v423 = vunpack.c.0.s8 %v422
        %v424 = vlaneseq
        %v425 = vshrl.u32 %v424, 7
        %v426 = vsub.s32 %v423, %v425
        %v427 = vrot.slane %v413, %v426
        %v428 = vcombine.low %v420, %v427
        %v430 = vsub.f32 %v135, %v428
        %v431 = vsub.f32 %v136, %v428
        %v432 = vsub.f32 %v137, %v428
        %v433 = vsub.f32 %v138, %v428
        %v434 = vmul.f32 %v430, %v430
        %v435 = vmul.f32 %v431, %v431
        %v436 = vmul.f32 %v432, %v432
        %v437 = vmul.f32 %v433, %v433
        %v442 = vlaneseq
        %v443 = vshrl.u32 %v442, 7
        %v444 = vsub.s32 0, %v443
        %v445 = vrot.slane %v434, %v444
        %v446 = vlaneseq
        %v447 = vshrl.u32 %v446, 7
        %v448 = vsub.s32 1, %v447
        %v449 = vrot.slane %v434, %v448
        %v450 = vlaneseq
        %v451 = vshrl.u32 %v450, 7
        %v452 = vsub.s32 2, %v451
        %v453 = vrot.slane %v434, %v452
        %v454 = vlaneseq
        %v455 = vshrl.u32 %v454, 7
        %v456 = vsub.s32 3, %v455
        %v457 = vrot.slane %v434, %v456
        %v458 = vlaneseq
        %v459 = vshrl.u32 %v458, 7
        %v460 = vsub.s32 4, %v459
        %v461 = vrot.slane %v434, %v460
        %v462 = vlaneseq
        %v463 = vshrl.u32 %v462, 7
        %v464 = vsub.s32 5, %v463
        %v465 = vrot.slane %v434, %v464
        %v466 = vlaneseq
        %v467 = vshrl.u32 %v466, 7
        %v468 = vsub.s32 6, %v467
        %v469 = vrot.slane %v434, %v468
        %v470 = vlaneseq
        %v471 = vshrl.u32 %v470, 7
        %v472 = vsub.s32 7, %v471
        %v473 = vrot.slane %v434, %v472
        %v474 = vlaneseq
        %v475 = vshrl.u32 %v474, 7
        %v476 = vsub.s32 0, %v475
        %v477 = vrot.slane %v435, %v476
        %v478 = vlaneseq
        %v479 = vshrl.u32 %v478, 7
        %v480 = vsub.s32 1, %v479
        %v481 = vrot.slane %v435, %v480
        %v482 = vlaneseq
        %v483 = vshrl.u32 %v482, 7
        %v484 = vsub.s32 2, %v483
        %v485 = vrot.slane %v435, %v484
        %v486 = vlaneseq
        %v487 = vshrl.u32 %v486, 7
        %v488 = vsub.s32 3, %v487
        %v489 = vrot.slane %v435, %v488
        %v490 = vlaneseq
        %v491 = vshrl.u32 %v490, 7
        %v492 = vsub.s32 4, %v491
        %v493 = vrot.slane %v435, %v492
        %v494 = vlaneseq
        %v495 = vshrl.u32 %v494, 7
        %v496 = vsub.s32 5, %v495
        %v497 = vrot.slane %v435, %v496
        %v498 = vlaneseq
        %v499 = vshrl.u32 %v498, 7
        %v500 = vsub.s32 6, %v499
        %v501 = vrot.slane %v435, %v500
        %v502 = vlaneseq
        %v503 = vshrl.u32 %v502, 7
        %v504 = vsub.s32 7, %v503
        %v505 = vrot.slane %v435, %v504
        %v506 = vlaneseq
        %v507 = vshrl.u32 %v506, 7
        %v508 = vsub.s32 0, %v507
        %v509 = vrot.slane %v436, %v508
        %v510 = vlaneseq
        %v511 = vshrl.u32 %v510, 7
        %v512 = vsub.s32 1, %v511
        %v513 = vrot.slane %v436, %v512
        %v514 = vlaneseq
        %v515 = vshrl.u32 %v514, 7
        %v516 = vsub.s32 2, %v515
        %v517 = vrot.slane %v436, %v516
        %v518 = vlaneseq
        %v519 = vshrl.u32 %v518, 7
        %v520 = vsub.s32 3, %v519
        %v521 = vrot.slane %v436, %v520
        %v522 = vlaneseq
        %v523 = vshrl.u32 %v522, 7
        %v524 = vsub.s32 4, %v523
        %v525 = vrot.slane %v436, %v524
        %v526 = vlaneseq
        %v527 = vshrl.u32 %v526, 7
        %v528 = vsub.s32 5, %v527
        %v529 = vrot.slane %v436, %v528
        %v530 = vlaneseq
        %v531 = vshrl.u32 %v530, 7
        %v532 = vsub.s32 6, %v531
        %v533 = vrot.slane %v436, %v532
        %v534 = vlaneseq
        %v535 = vshrl.u32 %v534, 7
        %v536 = vsub.s32 7, %v535
        %v537 = vrot.slane %v436, %v536
        %v538 = vlaneseq
        %v539 = vshrl.u32 %v538, 7
        %v540 = vsub.s32 0, %v539
        %v541 = vrot.slane %v437, %v540
        %v542 = vlaneseq
        %v543 = vshrl.u32 %v542, 7
        %v544 = vsub.s32 1, %v543
        %v545 = vrot.slane %v437, %v544
        %v546 = vlaneseq
        %v547 = vshrl.u32 %v546, 7
        %v548 = vsub.s32 2, %v547
        %v549 = vrot.slane %v437, %v548
        %v550 = vlaneseq
        %v551 = vshrl.u32 %v550, 7
        %v552 = vsub.s32 3, %v551
        %v553 = vrot.slane %v437, %v552
        %v554 = vlaneseq
        %v555 = vshrl.u32 %v554, 7
        %v556 = vsub.s32 4, %v555
        %v557 = vrot.slane %v437, %v556
        %v558 = vlaneseq
        %v559 = vshrl.u32 %v558, 7
        %v560 = vsub.s32 5, %v559
        %v561 = vrot.slane %v437, %v560
        %v562 = vlaneseq
        %v563 = vshrl.u32 %v562, 7
        %v564 = vsub.s32 6, %v563
        %v565 = vrot.slane %v437, %v564
        %v566 = vlaneseq
        %v567 = vshrl.u32 %v566, 7
        %v568 = vsub.s32 7, %v567
        %v569 = vrot.slane %v437, %v568
        %v602 = vsel %vm307, %v445, 0.0
        %v603 = vsel %vm307, %v477, 0.0
        %v604 = vadd.f32 %v602, %v603
        %v605 = vsel %vm307, %v509, 0.0
        %v606 = vadd.f32 %v604, %v605
        %v607 = vsel %vm307, %v541, 0.0
        %v608 = vadd.f32 %v606, %v607
        %v609 = vsel %vm307, %v449, 0.0
        %v610 = vsel %vm307, %v481, 0.0
        %v611 = vadd.f32 %v609, %v610
        %v612 = vsel %vm307, %v513, 0.0
        %v613 = vadd.f32 %v611, %v612
        %v614 = vsel %vm307, %v545, 0.0
        %v615 = vadd.f32 %v613, %v614
        %v616 = vsel %vm307, %v453, 0.0
        %v617 = vsel %vm307, %v485, 0.0
        %v618 = vadd.f32 %v616, %v617
        %v619 = vsel %vm307, %v517, 0.0
        %v620 = vadd.f32 %v618, %v619
        %v621 = vsel %vm307, %v549, 0.0
        %v622 = vadd.f32 %v620, %v621
        %v623 = vsel %vm307, %v457, 0.0
        %v624 = vsel %vm307, %v489, 0.0
        %v625 = vadd.f32 %v623, %v624
        %v626 = vsel %vm307, %v521, 0.0
        %v627 = vadd.f32 %v625, %v626
        %v628 = vsel %vm307, %v553, 0.0
        %v629 = vadd.f32 %v627, %v628
        %v630 = vsel %vm307, %v461, 0.0
        %v631 = vsel %vm307, %v493, 0.0
        %v632 = vadd.f32 %v630, %v631
        %v633 = vsel %vm307, %v525, 0.0
        %v634 = vadd.f32 %v632, %v633
        %v635 = vsel %vm307, %v557, 0.0
        %v636 = vadd.f32 %v634, %v635
        %v637 = vsel %vm307, %v465, 0.0
        %v638 = vsel %vm307, %v497, 0.0
        %v639 = vadd.f32 %v637, %v638
        %v640 = vsel %vm307, %v529, 0.0
        %v641 = vadd.f32 %v639, %v640
        %v642 = vsel %vm307, %v561, 0.0
        %v643 = vadd.f32 %v641, %v642
        %v644 = vsel %vm307, %v469, 0.0
        %v645 = vsel %vm307, %v501, 0.0
        %v646 = vadd.f32 %v644, %v645
        %v647 = vsel %vm307, %v533, 0.0
        %v648 = vadd.f32 %v646, %v647
        %v649 = vsel %vm307, %v565, 0.0
        %v650 = vadd.f32 %v648, %v649
        %v651 = vsel %vm307, %v473, 0.0
        %v652 = vsel %vm307, %v505, 0.0
        %v653 = vadd.f32 %v651, %v652
        %v654 = vsel %vm307, %v537, 0.0
        %v655 = vadd.f32 %v653, %v654
        %v656 = vsel %vm307, %v569, 0.0
        %v657 = vadd.f32 %v655, %v656
        %v658 = vmul.f32 %v608, 0.25
        %v659 = vmul.f32 %v615, 0.25
        %v660 = vmul.f32 %v622, 0.25
        %v661 = vmul.f32 %v629, 0.25
        %v662 = vmul.f32 %v636, 0.25
        %v663 = vmul.f32 %v643, 0.25
        %v664 = vmul.f32 %v650, 0.25
        %v665 = vmul.f32 %v657, 0.25
        %v666 = vadd.f32 %v658, 1e-08
        %v667 = vadd.f32 %v659, 1e-08
        %v668 = vadd.f32 %v660, 1e-08
        %v669 = vadd.f32 %v661, 1e-08
        %v670 = vadd.f32 %v662, 1e-08
        %v671 = vadd.f32 %v663, 1e-08
        %v672 = vadd.f32 %v664, 1e-08
        %v673 = vadd.f32 %v665, 1e-08
        %v674 = vrsqrt.pop %v666
        %v675 = vmul.f32 %v666, %v674
        %vm676 = vcmp.eq.f32.partialorder %v666, inf
        %v677 = vsel %vm676, %v666, %v675
        %vm678 = vcmp.eq.f32.partialorder %v666, 0.0
        %v679 = vand.u32 %v666, 2147483648
        %v680 = vsel %vm678, %v679, %v677
        %v681 = vrsqrt.pop %v667
        %v682 = vmul.f32 %v667, %v681
        %vm683 = vcmp.eq.f32.partialorder %v667, inf
        %v684 = vsel %vm683, %v667, %v682
        %vm685 = vcmp.eq.f32.partialorder %v667, 0.0
        %v686 = vand.u32 %v667, 2147483648
        %v687 = vsel %vm685, %v686, %v684
        %v688 = vrsqrt.pop %v668
        %v689 = vmul.f32 %v668, %v688
        %vm690 = vcmp.eq.f32.partialorder %v668, inf
        %v691 = vsel %vm690, %v668, %v689
        %vm692 = vcmp.eq.f32.partialorder %v668, 0.0
        %v693 = vand.u32 %v668, 2147483648
        %v694 = vsel %vm692, %v693, %v691
        %v695 = vrsqrt.pop %v669
        %v696 = vmul.f32 %v669, %v695
        %vm697 = vcmp.eq.f32.partialorder %v669, inf
        %v698 = vsel %vm697, %v669, %v696
        %vm699 = vcmp.eq.f32.partialorder %v669, 0.0
        %v700 = vand.u32 %v669, 2147483648
        %v701 = vsel %vm699, %v700, %v698
        %v702 = vrsqrt.pop %v670
        %v703 = vmul.f32 %v670, %v702
        %vm704 = vcmp.eq.f32.partialorder %v670, inf
        %v705 = vsel %vm704, %v670, %v703
        %vm706 = vcmp.eq.f32.partialorder %v670, 0.0
        %v707 = vand.u32 %v670, 2147483648
        %v708 = vsel %vm706, %v707, %v705
        %v709 = vrsqrt.pop %v671
        %v710 = vmul.f32 %v671, %v709
        %vm711 = vcmp.eq.f32.partialorder %v671, inf
        %v712 = vsel %vm711, %v671, %v710
        %vm713 = vcmp.eq.f32.partialorder %v671, 0.0
        %v714 = vand.u32 %v671, 2147483648
        %v715 = vsel %vm713, %v714, %v712
        %v716 = vrsqrt.pop %v672
        %v717 = vmul.f32 %v672, %v716
        %vm718 = vcmp.eq.f32.partialorder %v672, inf
        %v719 = vsel %vm718, %v672, %v717
        %vm720 = vcmp.eq.f32.partialorder %v672, 0.0
        %v721 = vand.u32 %v672, 2147483648
        %v722 = vsel %vm720, %v721, %v719
        %v723 = vrsqrt.pop %v673
        %v724 = vmul.f32 %v673, %v723
        %vm725 = vcmp.eq.f32.partialorder %v673, inf
        %v726 = vsel %vm725, %v673, %v724
        %vm727 = vcmp.eq.f32.partialorder %v673, 0.0
        %v728 = vand.u32 %v673, 2147483648
        %v729 = vsel %vm727, %v728, %v726
        %v730 = vsel %vm307, %v680, 0.0
        %v731 = vsel %vm307, %v687, 0.0
        %v732 = vadd.f32 %v730, %v731
        %v733 = vsel %vm307, %v694, 0.0
        %v734 = vadd.f32 %v732, %v733
        %v735 = vsel %vm307, %v701, 0.0
        %v736 = vadd.f32 %v734, %v735
        %v737 = vsel %vm307, %v708, 0.0
        %v738 = vadd.f32 %v736, %v737
        %v739 = vsel %vm307, %v715, 0.0
        %v740 = vadd.f32 %v738, %v739
        %v741 = vsel %vm307, %v722, 0.0
        %v742 = vadd.f32 %v740, %v741
        %v743 = vsel %vm307, %v729, 0.0
        %v744 = vadd.f32 %v742, %v743
        %745 = vadd.xlane.f32.xlu0 %v744
        %v746 = vpop.xlane.xlu0 %745
        %v747 = vmul.f32 %v746, 0.0009765625
        %v749 = vlaneseq
        %v750 = vshrl.u32 %v749, 7
        %v751 = vsub.s32 0, %v750
        %v752 = vrot.slane %v747, %v751
        %v754 = vlaneseq
        %vm755 = vcmp.ge.s32.totalorder %v754, 0
        %vm756 = vcmp.lt.s32.totalorder %v754, 256
        %vm757 = vmand %vm755, %vm756
        %758 = vst.msk [vmem:[%s134 + $0x8] sm:$0x3] %vm757, %v752
        %759 = vst.msk [vmem:[%s134 + $0x12] sm:$0x3] %vm757, %v752
        %760 = vst.msk [vmem:[%s134 + $0x1c] sm:$0x3] %vm757, %v752
        %761 = vst.msk [vmem:[%s134 + $0x26] sm:$0x3] %vm757, %v752
        %s762 = sand.u32 %s52, 1
        %s763 = scalar_lea.sflag [#allocation4], %s762
        %s764 = sand.u32 %s52, 1
        %s765 = smul.addr %s764, 40
        %s766 = scalar_lea.vmem [#allocation5], %s765
        // Predicated region
        $region29: #{tpu_custom_call.1} parent=23 // pred_check
          %p767 = pneg %p62
        $region30: #{tpu_custom_call.1} parent=23 // pred_check_branch
          %769 = sbr.rel (%p767) target = $region32
        $region31: #{tpu_custom_call.1} parent=23 // pred_region
          %s771 = ssub.s32 640, 640
          %772 = vsyncadd %s763, %s771
          %s773 = smul.addr %s18, 10
          %s774 = smul.addr %s773, 16
          %s775 = scalar_lea.hbm %s1, %s774
          %s776 = sshll.u32 %s766, 4
          %s777 = int_to_ptr.vmem [resolvable:$true] %s776
          %782 = dma.vmem_to_hbm [thread:$0]  %s777, 640, %s775, %s763, 160, 320, 10
        $region32: #{tpu_custom_call.1} parent=23 // pred_fallthru
          _
      $region24: #{tpu_custom_call.1} parent=5 // pred_fallthru
        _
      %p783 = scmp.le.s32.totalorder 2, %s13
      // Predicated region
      $region33: #{tpu_custom_call.1} parent=5 // pred_check
        %p784 = pneg %p783
      $region34: #{tpu_custom_call.1} parent=5 // pred_check_branch
        %786 = sbr.rel (%p784) target = $region36
      $region35: #{tpu_custom_call.1} parent=5 // pred_region
        %s787 = ssub.s32 %s13, 2
        // Predicated region
        $region37: #{tpu_custom_call.1} parent=35 // pred_check
          %p788 = pneg %p68
        $region38: #{tpu_custom_call.1} parent=35 // pred_check_branch
          %790 = sbr.rel (%p788) target = $region40
        $region39: #{tpu_custom_call.1} parent=35 // pred_region
          %s791 = sand.u32 %s53, 1
          %s792 = scalar_lea.sflag [#allocation4], %s791
          %s793 = sand.u32 %s53, 1
          %s794 = smul.addr %s793, 40
          %s795 = scalar_lea.vmem [#allocation5], %s794
          %796 = dma.done %s792, 640
        $region40: #{tpu_custom_call.1} parent=35 // pred_fallthru
          _
      $region36: #{tpu_custom_call.1} parent=5 // pred_fallthru
        _
    $region6: #{tpu_custom_call.1} parent=1 // loop_footer
      %s17 = sadd.s32 1, %s13
    $region7: #{tpu_custom_call.1} parent=1 // loop_footer_branch
      %12 = sbr.rel target = $region3
    $region8: #{tpu_custom_call.1} parent=1 // loop_exit
      _
    %797 = vsyncpa [#allocation3], 1
    %s798 = scalar_lea.sflag [#allocation3], 1
    %799 = vsyncpa %s798, 1
    %800 = vsyncpa [#allocation4], 1
    %s801 = scalar_lea.sflag [#allocation4], 1
    %802 = vsyncpa %s801, 1

</llo_original>
